<compile_context>
chip_gen: v7x
topology: tpu7x:2x2x1
jax: 0.10.0
libtpu: 0.0.40
codegen_flags: <defaults>
</compile_context>

<pallas_src>
import jax
import jax.numpy as jnp
from jax import lax
from jax.experimental import pallas as pl
from jax.experimental.pallas import tpu as pltpu

BN_EPS = 1e-5


def _decoder_kernel(x_ref, w1_ref, w2_ref, w3_ref, bn1_ref, bn2_ref, b3_ref,
                    o_ref):
    """Full fused forward for one independent batch (one grid step)."""
    mm_dtype = w1_ref.dtype                      # f32 (default) or bf16
    x = x_ref[...].astype(mm_dtype)

    # ---- Linear(num_classes -> 128); bias omitted (cancels under BN) ----
    h1 = jnp.dot(x, w1_ref[...], preferred_element_type=jnp.float32)

    # ---- BatchNorm1d(128): one-pass stats, folded scale/shift (f32) ----
    bn1 = bn1_ref[...]                           # (2, 128): row0=gamma, row1=beta
    mu1 = jnp.mean(h1, axis=0, keepdims=True)
    var1 = jnp.maximum(jnp.mean(h1 * h1, axis=0, keepdims=True) - mu1 * mu1, 0.0)
    s1 = bn1[0:1, :] * lax.rsqrt(var1 + BN_EPS)
    t1 = bn1[1:2, :] - mu1 * s1
    h1n = h1 * s1 + t1                           # single FMA per element

    # ---- Linear(128 -> 256); bias omitted (cancels under BN) ----
    h2 = jnp.dot(h1n.astype(mm_dtype), w2_ref[...],
                 preferred_element_type=jnp.float32)

    # ---- BatchNorm1d(256): one-pass stats, folded scale/shift (f32) ----
    bn2 = bn2_ref[...]                           # (2, 256)
    mu2 = jnp.mean(h2, axis=0, keepdims=True)
    var2 = jnp.maximum(jnp.mean(h2 * h2, axis=0, keepdims=True) - mu2 * mu2, 0.0)
    s2 = bn2[0:1, :] * lax.rsqrt(var2 + BN_EPS)
    t2 = bn2[1:2, :] - mu2 * s2
    h2n = h2 * s2 + t2

    # ---- Linear(256 -> action_length), output padded to 128 lanes ----
    out = jnp.dot(h2n.astype(mm_dtype), w3_ref[...],
                  preferred_element_type=jnp.float32) + b3_ref[...]
    o_ref[...] = out.astype(o_ref.dtype)


def pack_params(raw, action_length, *, mm_dtype=jnp.float32):
    """Pack raw per-layer params into the kernel's DMA-friendly layout.

    Weights are stored pre-cast in mm_dtype (MXU operand dtype); BN params and
    the final bias stay f32.  Output dim of W3/b3 is zero-padded to a multiple
    of 128 lanes so the final store is unmasked.
    """
    out_pad = max(128, -(-action_length // 128) * 128)
    w3p = jnp.zeros((raw["w3"].shape[0], out_pad), jnp.float32)
    w3p = w3p.at[:, :action_length].set(raw["w3"])
    b3p = jnp.zeros((1, out_pad), jnp.float32)
    b3p = b3p.at[:, :action_length].set(raw["b3"])
    return {
        "w1": raw["w1"].astype(mm_dtype),
        "w2": raw["w2"].astype(mm_dtype),
        "w3p": w3p.astype(mm_dtype),
        "bn1": jnp.concatenate([raw["g1"], raw["be1"]], axis=0),   # (2, 128)
        "bn2": jnp.concatenate([raw["g2"], raw["be2"]], axis=0),   # (2, 256)
        "b3p": b3p,
        "action_length": action_length,
    }


def _param_inputs(packed):
    return (packed["w1"], packed["w2"], packed["w3p"],
            packed["bn1"], packed["bn2"], packed["b3p"])


def decoder_forward(x, packed, *, trim=True):
    """Single-invocation forward.  x: (B, num_classes) or (num_classes,) f32."""
    if x.ndim < 2:
        x = x[None, :]                      # matches torch unsqueeze(0)
    if x.dtype != jnp.float32:
        x = x.astype(jnp.float32)
    B = x.shape[0]
    action_length = packed["action_length"]
    out_pad = packed["w3p"].shape[1]

    vmem = pl.BlockSpec(memory_space=pltpu.MemorySpace.VMEM)
    out = pl.pallas_call(
        _decoder_kernel,
        out_shape=jax.ShapeDtypeStruct((B, out_pad), jnp.float32),
        in_specs=[vmem] * 7,
        out_specs=vmem,
    )(x, *_param_inputs(packed))
    return out[:, :action_length] if trim else out


def decoder_forward_stacked(x, packed, *, trim=True):
    """G independent invocations in one launch.  x: (G, B, num_classes) f32.

    Each grid step is one independent BN batch; weights are DMA'd into VMEM
    once (same block index every step) and the grid axis is "parallel" so
    v7x's two TensorCores split the G invocations.
    """
    if x.dtype != jnp.float32:
        x = x.astype(jnp.float32)
    G, B, C = x.shape
    action_length = packed["action_length"]
    out_pad = packed["w3p"].shape[1]
    w1, w2, w3p, bn1, bn2, b3p = _param_inputs(packed)

    def fixed(arr):                          # whole array, same block each step
        return pl.BlockSpec(arr.shape, lambda g: (0,) * arr.ndim)

    out = pl.pallas_call(
        _decoder_kernel,
        out_shape=jax.ShapeDtypeStruct((G, B, out_pad), jnp.float32),
        grid=(G,),
        in_specs=[
            pl.BlockSpec((None, B, C), lambda g: (g, 0, 0)),       # x[g]
            fixed(w1), fixed(w2), fixed(w3p),
            fixed(bn1), fixed(bn2), fixed(b3p),
        ],
        out_specs=pl.BlockSpec((None, B, out_pad), lambda g: (g, 0, 0)),
        compiler_params=pltpu.CompilerParams(
            dimension_semantics=("parallel",)),
    )(x, w1, w2, w3p, bn1, bn2, b3p)
    return out[:, :, :action_length] if trim else out


def init_params(key, num_classes, action_length=3):
    """Deterministic synthetic init mirroring the module's shapes (raw)."""
    k1, k2, k3 = jax.random.split(key, 3)

    def lin(k, fan_in, fan_out):
        bound = 1.0 / jnp.sqrt(jnp.float32(fan_in))
        kw, kb = jax.random.split(k)
        w = jax.random.uniform(kw, (fan_in, fan_out), jnp.float32, -bound, bound)
        b = jax.random.uniform(kb, (1, fan_out), jnp.float32, -bound, bound)
        return w, b

    w1, b1 = lin(k1, num_classes, 128)
    w2, b2 = lin(k2, 128, 256)
    w3, b3 = lin(k3, 256, action_length)
    return {
        "w1": w1, "b1": b1,
        "g1": jnp.ones((1, 128), jnp.float32), "be1": jnp.zeros((1, 128), jnp.float32),
        "w2": w2, "b2": b2,
        "g2": jnp.ones((1, 256), jnp.float32), "be2": jnp.zeros((1, 256), jnp.float32),
        "w3": w3, "b3": b3,
    }


def _reference(x, p):
    """Pure-JAX reference of the full PyTorch forward (biases included)."""
    if x.ndim < 2:
        x = x[None, :]
    h1 = x @ p["w1"] + p["b1"]
    mu1 = h1.mean(0, keepdims=True)
    v1 = ((h1 - mu1) ** 2).mean(0, keepdims=True)
    h1 = (h1 - mu1) / jnp.sqrt(v1 + BN_EPS) * p["g1"] + p["be1"]
    h2 = h1 @ p["w2"] + p["b2"]
    mu2 = h2.mean(0, keepdims=True)
    v2 = ((h2 - mu2) ** 2).mean(0, keepdims=True)
    h2 = (h2 - mu2) / jnp.sqrt(v2 + BN_EPS) * p["g2"] + p["be2"]
    return h2 @ p["w3"] + p["b3"]


if __name__ == "__main__":
    num_classes = 32
    action_length = 3
    batch = 8          # NOTE: for throughput, batch >= 128 fills the MXU rows
    groups = 4         # stacked independent invocations for the grid path

    key = jax.random.PRNGKey(0)
    kx, kp, kg = jax.random.split(key, 3)
    raw = init_params(kp, num_classes, action_length)
    packed = pack_params(raw, action_length)     # f32 weights (default path)

    # --- single-call path ---
    x = jax.random.normal(kx, (batch, num_classes), jnp.float32)
    ref = _reference(x, raw)
    out = jax.block_until_ready(decoder_forward(x, packed))
    assert out.shape == (batch, action_length)
    assert jnp.allclose(out, ref, atol=1e-4, rtol=1e-4)

    # --- stacked (grid) path: G independent BN batches, one launch ---
    xg = jax.random.normal(kg, (groups, batch, num_classes), jnp.float32)
    refg = jnp.stack([_reference(xg[g], raw) for g in range(groups)])
    outg = jax.block_until_ready(decoder_forward_stacked(xg, packed))
    assert outg.shape == (groups, batch, action_length)
    assert jnp.allclose(outg, refg, atol=1e-4, rtol=1e-4)

    print("KERNEL_OK")
</pallas_src>

<mosaic_0001>
module attributes {stable_mosaic.version = 11 : i64} {
  func.func @_decoder_kernel(%arg0: memref<8x32xf32, #tpu.memory_space<vmem>>, %arg1: memref<32x128xf32, #tpu.memory_space<vmem>>, %arg2: memref<128x256xf32, #tpu.memory_space<vmem>>, %arg3: memref<256x128xf32, #tpu.memory_space<vmem>>, %arg4: memref<2x128xf32, #tpu.memory_space<vmem>>, %arg5: memref<2x256xf32, #tpu.memory_space<vmem>>, %arg6: memref<1x128xf32, #tpu.memory_space<vmem>>, %arg7: memref<8x128xf32, #tpu.memory_space<vmem>>) attributes {dimension_semantics = [], scalar_prefetch = 0 : i64, scratch_operands = 0 : i64, tpu.core_type = #tpu.core_type<tc>} {
    %c0 = arith.constant 0 : index
    %c0_0 = arith.constant 0 : index
    %0 = vector.load %arg0[%c0, %c0_0] : memref<8x32xf32, #tpu.memory_space<vmem>>, vector<8x32xf32>
    %c0_1 = arith.constant 0 : index
    %c0_2 = arith.constant 0 : index
    %1 = vector.load %arg1[%c0_1, %c0_2] : memref<32x128xf32, #tpu.memory_space<vmem>>, vector<32x128xf32>
    %cst = arith.constant dense<0.000000e+00> : vector<8x128xf32>
    %2 = tpu.matmul %0, %1, %cst {dimension_numbers = #tpu.dot_dimension_numbers<[1], [0], [0], [1], [0, 0, 1, 1], [], []>} : vector<8x32xf32>, vector<32x128xf32>, vector<8x128xf32> -> vector<8x128xf32>
    %c0_3 = arith.constant 0 : index
    %c0_4 = arith.constant 0 : index
    %3 = vector.load %arg4[%c0_3, %c0_4] : memref<2x128xf32, #tpu.memory_space<vmem>>, vector<2x128xf32>
    %cst_5 = arith.constant dense<0.000000e+00> : vector<128xf32>
    %4 = vector.multi_reduction <add>, %2, %cst_5 [0] : vector<8x128xf32> to vector<128xf32>
    %5 = vector.shape_cast %4 : vector<128xf32> to vector<1x128xf32>
    %cst_6 = arith.constant 8.000000e+00 : f32
    %6 = vector.broadcast %cst_6 : f32 to vector<1x128xf32>
    %7 = arith.divf %5, %6 : vector<1x128xf32>
    %8 = arith.mulf %2, %2 : vector<8x128xf32>
    %cst_7 = arith.constant dense<0.000000e+00> : vector<128xf32>
    %9 = vector.multi_reduction <add>, %8, %cst_7 [0] : vector<8x128xf32> to vector<128xf32>
    %10 = vector.shape_cast %9 : vector<128xf32> to vector<1x128xf32>
    %cst_8 = arith.constant 8.000000e+00 : f32
    %11 = vector.broadcast %cst_8 : f32 to vector<1x128xf32>
    %12 = arith.divf %10, %11 : vector<1x128xf32>
    %13 = arith.mulf %7, %7 : vector<1x128xf32>
    %14 = arith.subf %12, %13 : vector<1x128xf32>
    %cst_9 = arith.constant 0.000000e+00 : f32
    %15 = vector.broadcast %cst_9 : f32 to vector<1x128xf32>
    %16 = arith.maximumf %14, %15 : vector<1x128xf32>
    %17 = vector.extract_strided_slice %3 {offsets = [0, 0], sizes = [1, 128], strides = [1, 1]} : vector<2x128xf32> to vector<1x128xf32>
    %cst_10 = arith.constant 9.99999974E-6 : f32
    %18 = vector.broadcast %cst_10 : f32 to vector<1x128xf32>
    %19 = arith.addf %16, %18 : vector<1x128xf32>
    %20 = math.rsqrt %19 : vector<1x128xf32>
    %21 = arith.mulf %17, %20 : vector<1x128xf32>
    %22 = vector.extract_strided_slice %3 {offsets = [1, 0], sizes = [1, 128], strides = [1, 1]} : vector<2x128xf32> to vector<1x128xf32>
    %23 = arith.mulf %7, %21 : vector<1x128xf32>
    %24 = arith.subf %22, %23 : vector<1x128xf32>
    %25 = vector.broadcast %21 : vector<1x128xf32> to vector<8x128xf32>
    %26 = arith.mulf %2, %25 : vector<8x128xf32>
    %27 = vector.broadcast %24 : vector<1x128xf32> to vector<8x128xf32>
    %28 = arith.addf %26, %27 : vector<8x128xf32>
    %c0_11 = arith.constant 0 : index
    %c0_12 = arith.constant 0 : index
    %29 = vector.load %arg2[%c0_11, %c0_12] : memref<128x256xf32, #tpu.memory_space<vmem>>, vector<128x256xf32>
    %cst_13 = arith.constant dense<0.000000e+00> : vector<8x256xf32>
    %30 = tpu.matmul %28, %29, %cst_13 {dimension_numbers = #tpu.dot_dimension_numbers<[1], [0], [0], [1], [0, 0, 1, 1], [], []>} : vector<8x128xf32>, vector<128x256xf32>, vector<8x256xf32> -> vector<8x256xf32>
    %c0_14 = arith.constant 0 : index
    %c0_15 = arith.constant 0 : index
    %31 = vector.load %arg5[%c0_14, %c0_15] : memref<2x256xf32, #tpu.memory_space<vmem>>, vector<2x256xf32>
    %cst_16 = arith.constant dense<0.000000e+00> : vector<256xf32>
    %32 = vector.multi_reduction <add>, %30, %cst_16 [0] : vector<8x256xf32> to vector<256xf32>
    %33 = vector.shape_cast %32 : vector<256xf32> to vector<1x256xf32>
    %cst_17 = arith.constant 8.000000e+00 : f32
    %34 = vector.broadcast %cst_17 : f32 to vector<1x256xf32>
    %35 = arith.divf %33, %34 : vector<1x256xf32>
    %36 = arith.mulf %30, %30 : vector<8x256xf32>
    %cst_18 = arith.constant dense<0.000000e+00> : vector<256xf32>
    %37 = vector.multi_reduction <add>, %36, %cst_18 [0] : vector<8x256xf32> to vector<256xf32>
    %38 = vector.shape_cast %37 : vector<256xf32> to vector<1x256xf32>
    %cst_19 = arith.constant 8.000000e+00 : f32
    %39 = vector.broadcast %cst_19 : f32 to vector<1x256xf32>
    %40 = arith.divf %38, %39 : vector<1x256xf32>
    %41 = arith.mulf %35, %35 : vector<1x256xf32>
    %42 = arith.subf %40, %41 : vector<1x256xf32>
    %cst_20 = arith.constant 0.000000e+00 : f32
    %43 = vector.broadcast %cst_20 : f32 to vector<1x256xf32>
    %44 = arith.maximumf %42, %43 : vector<1x256xf32>
    %45 = vector.extract_strided_slice %31 {offsets = [0, 0], sizes = [1, 256], strides = [1, 1]} : vector<2x256xf32> to vector<1x256xf32>
    %cst_21 = arith.constant 9.99999974E-6 : f32
    %46 = vector.broadcast %cst_21 : f32 to vector<1x256xf32>
    %47 = arith.addf %44, %46 : vector<1x256xf32>
    %48 = math.rsqrt %47 : vector<1x256xf32>
    %49 = arith.mulf %45, %48 : vector<1x256xf32>
    %50 = vector.extract_strided_slice %31 {offsets = [1, 0], sizes = [1, 256], strides = [1, 1]} : vector<2x256xf32> to vector<1x256xf32>
    %51 = arith.mulf %35, %49 : vector<1x256xf32>
    %52 = arith.subf %50, %51 : vector<1x256xf32>
    %53 = vector.broadcast %49 : vector<1x256xf32> to vector<8x256xf32>
    %54 = arith.mulf %30, %53 : vector<8x256xf32>
    %55 = vector.broadcast %52 : vector<1x256xf32> to vector<8x256xf32>
    %56 = arith.addf %54, %55 : vector<8x256xf32>
    %c0_22 = arith.constant 0 : index
    %c0_23 = arith.constant 0 : index
    %57 = vector.load %arg3[%c0_22, %c0_23] : memref<256x128xf32, #tpu.memory_space<vmem>>, vector<256x128xf32>
    %cst_24 = arith.constant dense<0.000000e+00> : vector<8x128xf32>
    %58 = tpu.matmul %56, %57, %cst_24 {dimension_numbers = #tpu.dot_dimension_numbers<[1], [0], [0], [1], [0, 0, 1, 1], [], []>} : vector<8x256xf32>, vector<256x128xf32>, vector<8x128xf32> -> vector<8x128xf32>
    %c0_25 = arith.constant 0 : index
    %c0_26 = arith.constant 0 : index
    %59 = vector.load %arg6[%c0_25, %c0_26] : memref<1x128xf32, #tpu.memory_space<vmem>>, vector<1x128xf32>
    %60 = vector.broadcast %59 : vector<1x128xf32> to vector<8x128xf32>
    %61 = arith.addf %58, %60 : vector<8x128xf32>
    %c0_27 = arith.constant 0 : index
    %c0_28 = arith.constant 0 : index
    %62 = vector.load %arg7[%c0_27, %c0_28] : memref<8x128xf32, #tpu.memory_space<vmem>>, vector<8x128xf32>
    tpu.vector_store %arg7[%c0_27, %c0_28], %61 {strides = array<i32>} : memref<8x128xf32, #tpu.memory_space<vmem>>, vector<8x128xf32>,
    return
  }
}

</mosaic_0001>

<llo_original>
// kernel: tpu_custom_call.1
$region0: #{tpu_custom_call.1}
  #allocation0 [shape = 'u32[]', space=smem, size = 0x4, offset = 0x4, fixed_abs, tag = 'smem constant byte address 0x4 - core index']
  #allocation1 [shape = 'u32[144,128]{1,0:T(1,128)}', space=vmem, size = 0x12000, scoped, tag = 'internal scratch']
  %s0 = inlined_call_operand.hbm [shape: f32[8,32], index: 0, kind: input, shape index: {}]
  %s1 = inlined_call_operand.hbm [shape: f32[32,128], index: 1, kind: input, shape index: {}]
  %s2 = inlined_call_operand.hbm [shape: f32[128,256], index: 2, kind: input, shape index: {}]
  %s3 = inlined_call_operand.hbm [shape: f32[256,128], index: 3, kind: input, shape index: {}]
  %s4 = inlined_call_operand.vmem [shape: f32[2,128], index: 4, kind: input, shape index: {}]
  %s5 = inlined_call_operand.vmem [shape: f32[2,256], index: 5, kind: input, shape index: {}]
  %s6 = inlined_call_operand.vmem [shape: f32[1,128], index: 6, kind: input, shape index: {}]
  %s7 = inlined_call_operand.hbm [shape: f32[8,128], index: 7, kind: output, shape index: {}]
  %s8 = sld [smem:[#allocation0]]
  $region54: #{tpu_custom_call.1} parent=0
    _
  %s10 = ssub.s32 1, %s8
  %s11 = scalar_select 0, %s10, %s8
  $region1: #{tpu_custom_call.1} parent=0
    #allocation2 [shape = 'u8[4096]{0}', space=vmem, size = 0x1000, scoped, tag = 'input window, operand 0, single buffered']
    #allocation3 [shape = 's32[1]{0}', space=sflag, size = 0x4, scoped, tag = 'scoped memory for tpu_custom_call.1']
    #allocation4 [shape = 's32[1]{0}', space=sflag, size = 0x4, scoped, tag = 'scoped memory for tpu_custom_call.1']
    #allocation5 [shape = 'u8[16384]{0}', space=vmem, size = 0x4000, scoped, tag = 'input window, operand 1, single buffered']
    #allocation6 [shape = 's32[1]{0}', space=sflag, size = 0x4, scoped, tag = 'scoped memory for tpu_custom_call.1']
    #allocation7 [shape = 'u8[131072]{0}', space=vmem, size = 0x20000, scoped, tag = 'input window, operand 2, single buffered']
    #allocation8 [shape = 'u8[131072]{0}', space=vmem, size = 0x20000, scoped, tag = 'input window, operand 3, single buffered']
    #allocation9 [shape = 's32[1]{0}', space=sflag, size = 0x4, scoped, tag = 'scoped memory for tpu_custom_call.1']
    #allocation10 [shape = 'u8[4096]{0}', space=vmem, size = 0x1000, scoped, tag = 'output window, operand 0, single buffered']
    %12 = vsyncpa [#allocation3], 0
    %13 = vsyncpa [#allocation6], 0
    %14 = vsyncpa [#allocation9], 0
    %15 = vsyncpa [#allocation4], 0
    // Predicated region
    $region2: #{tpu_custom_call.1} parent=1 // pred_check
      _
    $region3: #{tpu_custom_call.1} parent=1 // pred_check_branch
      %17 = sbr.rel (0) target = $region5
    $region4: #{tpu_custom_call.1} parent=1 // pred_region
      %s19 = ssub.s32 128, 128
      %20 = vsyncadd [#allocation3], %s19
      %s22 = sshll.u32 [#allocation2], 4
      %s23 = int_to_ptr.vmem [resolvable:$true] %s22
      %25 = dma.hbm_to_vmem [thread:$0]  %s0, 128, %s23, [#allocation3]
    $region5: #{tpu_custom_call.1} parent=1 // pred_fallthru
      _
    // Predicated region
    $region6: #{tpu_custom_call.1} parent=1 // pred_check
      _
    $region7: #{tpu_custom_call.1} parent=1 // pred_check_branch
      %27 = sbr.rel (0) target = $region9
    $region8: #{tpu_custom_call.1} parent=1 // pred_region
      %s29 = ssub.s32 512, 512
      %30 = vsyncadd [#allocation6], %s29
      %s31 = sshll.u32 [#allocation5], 4
      %s32 = int_to_ptr.vmem [resolvable:$true] %s31
      %37 = dma.hbm_to_vmem [thread:$0]  %s1, 512, %s32, [#allocation6], 128, 128, 8
    $region9: #{tpu_custom_call.1} parent=1 // pred_fallthru
      _
    // Predicated region
    $region10: #{tpu_custom_call.1} parent=1 // pred_check
      _
    $region11: #{tpu_custom_call.1} parent=1 // pred_check_branch
      %39 = sbr.rel (0) target = $region13
    $region12: #{tpu_custom_call.1} parent=1 // pred_region
      %s41 = ssub.s32 4096, 4096
      %42 = vsyncadd [#allocation6], %s41
      %s43 = sshll.u32 [#allocation7], 4
      %s44 = int_to_ptr.vmem [resolvable:$true] %s43
      %49 = dma.hbm_to_vmem [thread:$0]  %s2, 4096, %s44, [#allocation6], 256, 256, 16
    $region13: #{tpu_custom_call.1} parent=1 // pred_fallthru
      _
    // Predicated region
    $region14: #{tpu_custom_call.1} parent=1 // pred_check
      _
    $region15: #{tpu_custom_call.1} parent=1 // pred_check_branch
      %51 = sbr.rel (0) target = $region17
    $region16: #{tpu_custom_call.1} parent=1 // pred_region
      %s53 = ssub.s32 4096, 4096
      %54 = vsyncadd [#allocation9], %s53
      %s55 = sshll.u32 [#allocation8], 4
      %s56 = int_to_ptr.vmem [resolvable:$true] %s55
      %61 = dma.hbm_to_vmem [thread:$0]  %s3, 4096, %s56, [#allocation9], 128, 128, 8
    $region17: #{tpu_custom_call.1} parent=1 // pred_fallthru
      _
    // Predicated region
    $region18: #{tpu_custom_call.1} parent=1 // pred_check
      _
    $region19: #{tpu_custom_call.1} parent=1 // pred_check_branch
      %63 = sbr.rel (0) target = $region21
    $region20: #{tpu_custom_call.1} parent=1 // pred_region
      _
    $region21: #{tpu_custom_call.1} parent=1 // pred_fallthru
      _
    // Predicated region
    $region22: #{tpu_custom_call.1} parent=1 // pred_check
      _
    $region23: #{tpu_custom_call.1} parent=1 // pred_check_branch
      %65 = sbr.rel (0) target = $region25
    $region24: #{tpu_custom_call.1} parent=1 // pred_region
      _
    $region25: #{tpu_custom_call.1} parent=1 // pred_fallthru
      _
    // Predicated region
    $region26: #{tpu_custom_call.1} parent=1 // pred_check
      _
    $region27: #{tpu_custom_call.1} parent=1 // pred_check_branch
      %67 = sbr.rel (0) target = $region29
    $region28: #{tpu_custom_call.1} parent=1 // pred_region
      _
    $region29: #{tpu_custom_call.1} parent=1 // pred_fallthru
      _
    // Predicated region
    $region30: #{tpu_custom_call.1} parent=1 // pred_check
      _
    $region31: #{tpu_custom_call.1} parent=1 // pred_check_branch
      %69 = sbr.rel (0) target = $region33
    $region32: #{tpu_custom_call.1} parent=1 // pred_region
      %70 = dma.done [#allocation3], 128
    $region33: #{tpu_custom_call.1} parent=1 // pred_fallthru
      _
    // Predicated region
    $region34: #{tpu_custom_call.1} parent=1 // pred_check
      _
    $region35: #{tpu_custom_call.1} parent=1 // pred_check_branch
      %72 = sbr.rel (0) target = $region37
    $region36: #{tpu_custom_call.1} parent=1 // pred_region
      %73 = dma.done [#allocation6], 512
    $region37: #{tpu_custom_call.1} parent=1 // pred_fallthru
      _
    // Predicated region
    $region38: #{tpu_custom_call.1} parent=1 // pred_check
      _
    $region39: #{tpu_custom_call.1} parent=1 // pred_check_branch
      %75 = sbr.rel (0) target = $region41
    $region40: #{tpu_custom_call.1} parent=1 // pred_region
      %76 = dma.done [#allocation6], 4096
    $region41: #{tpu_custom_call.1} parent=1 // pred_fallthru
      _
    // Predicated region
    $region42: #{tpu_custom_call.1} parent=1 // pred_check
      _
    $region43: #{tpu_custom_call.1} parent=1 // pred_check_branch
      %78 = sbr.rel (0) target = $region45
    $region44: #{tpu_custom_call.1} parent=1 // pred_region
      %79 = dma.done [#allocation9], 4096
    $region45: #{tpu_custom_call.1} parent=1 // pred_fallthru
      _
    %v80 = vld [vmem:[#allocation2] sm:$0xff]
    %v81 = vld [vmem:[#allocation5] sm:$0xff]
    %v82 = vld [vmem:[#allocation5 + $0x8] sm:$0xff]
    %v83 = vld [vmem:[#allocation5 + $0x10] sm:$0xff]
    %v84 = vld [vmem:[#allocation5 + $0x18] sm:$0xff]
    %vm85 = vcmask 261120
    %v87 = vsel %vm85, %v80, 0
    %89 = vmatprep.subr.mxu0 0.0
    %90 = vmatpush1.msra.mxu0 %v81
    %91 = vmatprep.subr.mxu0 0.0
    %92 = vmatpush1.msra.mxu0 %v82
    %93 = vmatprep.subr.mxu0 0.0
    %94 = vmatpush1.msra.mxu0 %v83
    %95 = vmatprep.subr.mxu0 0.0
    %96 = vmatpush1.msra.mxu0 %v84
    %97 = vmatprep.subr.mxu0 0.0
    %98 = vmatpush1.msra.mxu0 0.0
    %99 = vmatprep.subr.mxu0 0.0
    %100 = vmatpush1.msra.mxu0 0.0
    %101 = vmatprep.subr.mxu0 0.0
    %102 = vmatpush1.msra.mxu0 0.0
    %103 = vmatprep.subr.mxu0 0.0
    %104 = vmatpush1.msra.mxu0 0.0
    %105 = vmatprep.subr.mxu0 0.0
    %106 = vmatpush1.msra.mxu0 0.0
    %107 = vmatprep.subr.mxu0 0.0
    %108 = vmatpush1.msra.mxu0 0.0
    %109 = vmatprep.subr.mxu0 0.0
    %110 = vmatpush1.msra.mxu0 0.0
    %111 = vmatprep.subr.mxu0 0.0
    %112 = vmatpush1.msra.mxu0 0.0
    %113 = vmatprep.subr.mxu0 0.0
    %114 = vmatpush1.msra.mxu0 0.0
    %115 = vmatprep.subr.mxu0 0.0
    %116 = vmatpush1.msra.mxu0 0.0
    %117 = vmatprep.subr.mxu0 0.0
    %118 = vmatpush1.msra.mxu0 0.0
    %119 = vmatprep.subr.mxu0 0.0
    %120 = vmatpush1.msra.mxu0 0.0
    %121 = vmatprep.subr.mxu0 0.0
    %122 = vmatpush1.msra.mxu0 0.0
    %123 = vmatprep.subr.mxu0 0.0
    %124 = vmatpush1.msra.mxu0 0.0
    %125 = vmatprep.subr.mxu0 0.0
    %126 = vmatpush1.msra.mxu0 0.0
    %127 = vmatprep.subr.mxu0 0.0
    %128 = vmatpush1.msra.mxu0 0.0
    %129 = vmatprep.subr.mxu0 0.0
    %130 = vmatpush1.msra.mxu0 0.0
    %131 = vmatprep.subr.mxu0 0.0
    %132 = vmatpush1.msra.mxu0 0.0
    %133 = vmatprep.subr.mxu0 0.0
    %134 = vmatpush1.msra.mxu0 0.0
    %135 = vmatprep.subr.mxu0 0.0
    %136 = vmatpush1.msra.mxu0 0.0
    %137 = vmatprep.subr.mxu0 0.0
    %138 = vmatpush1.msra.mxu0 0.0
    %139 = vmatprep.subr.mxu0 0.0
    %140 = vmatpush1.msra.mxu0 0.0
    %141 = vmatprep.subr.mxu0 0.0
    %142 = vmatpush1.msra.mxu0 0.0
    %143 = vmatprep.subr.mxu0 0.0
    %144 = vmatpush1.msra.mxu0 0.0
    %145 = vmatprep.subr.mxu0 0.0
    %146 = vmatpush1.msra.mxu0 0.0
    %147 = vmatprep.subr.mxu0 0.0
    %148 = vmatpush1.msra.mxu0 0.0
    %149 = vmatprep.subr.mxu0 0.0
    %150 = vmatpush1.msra.mxu0 0.0
    %151 = vmatprep.subr.mxu0 0.0
    %152 = vmatpush1.msra.mxu0 0.0
    %153 = vmatprep.mubr.f32.mxu0 0.0
    %154 = vmatmul.mubr.f32.gmra.mrb[0].mxu0 %v87
    %v155 = vpop.f32.mrb[0].mxu0
    %v156 = vadd.f32 0.0, %v155
    %v157 = vpop.f32.mrb[0].mxu0
    %158 = vdwg.mxu0
    %v159 = vld [vmem:[%s4] sm:$0x3]
    %v160 = vrot.slane %v156, 4
    %v161 = vadd.f32 %v156, %v160
    %v162 = vrot.slane %v161, 2
    %v163 = vadd.f32 %v161, %v162
    %v164 = vrot.slane %v163, 1
    %v165 = vadd.f32 %v163, %v164
    %v166 = vrcp.pop 8.0
    %v167 = vmul.f32 %v165, %v166
    %v168 = vmul.f32 %v156, %v156
    %v169 = vrot.slane %v168, 4
    %v170 = vadd.f32 %v168, %v169
    %v171 = vrot.slane %v170, 2
    %v172 = vadd.f32 %v170, %v171
    %v173 = vrot.slane %v172, 1
    %v174 = vadd.f32 %v172, %v173
    %v175 = vmul.f32 %v174, %v166
    %v176 = vmul.f32 %v167, %v167
    %v177 = vsub.f32 %v175, %v176
    %v178 = vmax.f32 %v177, 0.0
    %v179 = vadd.f32 %v178, 1e-05
    %v180 = vrsqrt.pop %v179
    %v181 = vmul.f32 %v159, %v180
    %v182 = vmul.f32 %v167, %v181
    %v184 = vrot.slane %v182, 7
    %v186 = vsub.f32 %v159, %v184
    %v187 = vlaneseq
    %v188 = vshrl.u32 %v187, 7
    %v189 = vsub.s32 0, %v188
    %v190 = vrot.slane %v181, %v189
    %v191 = vmul.f32 %v156, %v190
    %v192 = vlaneseq
    %v193 = vshrl.u32 %v192, 7
    %v194 = vsub.s32 1, %v193
    %v195 = vrot.slane %v186, %v194
    %v196 = vadd.f32 %v191, %v195
    %v197 = vld [vmem:[#allocation7] sm:$0xff]
    %v198 = vld [vmem:[#allocation7 + $0x8] sm:$0xff]
    %v199 = vld [vmem:[#allocation7 + $0x10] sm:$0xff]
    %v200 = vld [vmem:[#allocation7 + $0x18] sm:$0xff]
    %v201 = vld [vmem:[#allocation7 + $0x20] sm:$0xff]
    %v202 = vld [vmem:[#allocation7 + $0x28] sm:$0xff]
    %v203 = vld [vmem:[#allocation7 + $0x30] sm:$0xff]
    %v204 = vld [vmem:[#allocation7 + $0x38] sm:$0xff]
    %v205 = vld [vmem:[#allocation7 + $0x40] sm:$0xff]
    %v206 = vld [vmem:[#allocation7 + $0x48] sm:$0xff]
    %v207 = vld [vmem:[#allocation7 + $0x50] sm:$0xff]
    %v208 = vld [vmem:[#allocation7 + $0x58] sm:$0xff]
    %v209 = vld [vmem:[#allocation7 + $0x60] sm:$0xff]
    %v210 = vld [vmem:[#allocation7 + $0x68] sm:$0xff]
    %v211 = vld [vmem:[#allocation7 + $0x70] sm:$0xff]
    %v212 = vld [vmem:[#allocation7 + $0x78] sm:$0xff]
    %v213 = vld [vmem:[#allocation7 + $0x80] sm:$0xff]
    %v214 = vld [vmem:[#allocation7 + $0x88] sm:$0xff]
    %v215 = vld [vmem:[#allocation7 + $0x90] sm:$0xff]
    %v216 = vld [vmem:[#allocation7 + $0x98] sm:$0xff]
    %v217 = vld [vmem:[#allocation7 + $0xa0] sm:$0xff]
    %v218 = vld [vmem:[#allocation7 + $0xa8] sm:$0xff]
    %v219 = vld [vmem:[#allocation7 + $0xb0] sm:$0xff]
    %v220 = vld [vmem:[#allocation7 + $0xb8] sm:$0xff]
    %v221 = vld [vmem:[#allocation7 + $0xc0] sm:$0xff]
    %v222 = vld [vmem:[#allocation7 + $0xc8] sm:$0xff]
    %v223 = vld [vmem:[#allocation7 + $0xd0] sm:$0xff]
    %v224 = vld [vmem:[#allocation7 + $0xd8] sm:$0xff]
    %v225 = vld [vmem:[#allocation7 + $0xe0] sm:$0xff]
    %v226 = vld [vmem:[#allocation7 + $0xe8] sm:$0xff]
    %v227 = vld [vmem:[#allocation7 + $0xf0] sm:$0xff]
    %v228 = vld [vmem:[#allocation7 + $0xf8] sm:$0xff]
    %229 = vmatprep.subr.mxu0 %v198
    %230 = vmatpush1.msra.mxu0 %v197
    %231 = vmatprep.subr.mxu0 %v200
    %232 = vmatpush1.msra.mxu0 %v199
    %233 = vmatprep.subr.mxu0 %v202
    %234 = vmatpush1.msra.mxu0 %v201
    %235 = vmatprep.subr.mxu0 %v204
    %236 = vmatpush1.msra.mxu0 %v203
    %237 = vmatprep.subr.mxu0 %v206
    %238 = vmatpush1.msra.mxu0 %v205
    %239 = vmatprep.subr.mxu0 %v208
    %240 = vmatpush1.msra.mxu0 %v207
    %241 = vmatprep.subr.mxu0 %v210
    %242 = vmatpush1.msra.mxu0 %v209
    %243 = vmatprep.subr.mxu0 %v212
    %244 = vmatpush1.msra.mxu0 %v211
    %245 = vmatprep.subr.mxu0 %v214
    %246 = vmatpush1.msra.mxu0 %v213
    %247 = vmatprep.subr.mxu0 %v216
    %248 = vmatpush1.msra.mxu0 %v215
    %249 = vmatprep.subr.mxu0 %v218
    %250 = vmatpush1.msra.mxu0 %v217
    %251 = vmatprep.subr.mxu0 %v220
    %252 = vmatpush1.msra.mxu0 %v219
    %253 = vmatprep.subr.mxu0 %v222
    %254 = vmatpush1.msra.mxu0 %v221
    %255 = vmatprep.subr.mxu0 %v224
    %256 = vmatpush1.msra.mxu0 %v223
    %257 = vmatprep.subr.mxu0 %v226
    %258 = vmatpush1.msra.mxu0 %v225
    %259 = vmatprep.subr.mxu0 %v228
    %260 = vmatpush1.msra.mxu0 %v227
    %261 = vmatprep.subr.mxu0 0.0
    %262 = vmatpush1.msra.mxu0 0.0
    %263 = vmatprep.subr.mxu0 0.0
    %264 = vmatpush1.msra.mxu0 0.0
    %265 = vmatprep.subr.mxu0 0.0
    %266 = vmatpush1.msra.mxu0 0.0
    %267 = vmatprep.subr.mxu0 0.0
    %268 = vmatpush1.msra.mxu0 0.0
    %269 = vmatprep.subr.mxu0 0.0
    %270 = vmatpush1.msra.mxu0 0.0
    %271 = vmatprep.subr.mxu0 0.0
    %272 = vmatpush1.msra.mxu0 0.0
    %273 = vmatprep.subr.mxu0 0.0
    %274 = vmatpush1.msra.mxu0 0.0
    %275 = vmatprep.subr.mxu0 0.0
    %276 = vmatpush1.msra.mxu0 0.0
    %277 = vmatprep.subr.mxu0 0.0
    %278 = vmatpush1.msra.mxu0 0.0
    %279 = vmatprep.subr.mxu0 0.0
    %280 = vmatpush1.msra.mxu0 0.0
    %281 = vmatprep.subr.mxu0 0.0
    %282 = vmatpush1.msra.mxu0 0.0
    %283 = vmatprep.subr.mxu0 0.0
    %284 = vmatpush1.msra.mxu0 0.0
    %285 = vmatprep.subr.mxu0 0.0
    %286 = vmatpush1.msra.mxu0 0.0
    %287 = vmatprep.subr.mxu0 0.0
    %288 = vmatpush1.msra.mxu0 0.0
    %289 = vmatprep.subr.mxu0 0.0
    %290 = vmatpush1.msra.mxu0 0.0
    %291 = vmatprep.subr.mxu0 0.0
    %292 = vmatpush1.msra.mxu0 0.0
    %293 = vmatprep.mubr.f32.mxu0 0.0
    %294 = vmatmul.mubr.f32.gmra.mrb[0].mxu0 %v196
    %v295 = vpop.f32.mrb[0].mxu0
    %v296 = vadd.f32 0.0, %v295
    %v297 = vpop.f32.mrb[0].mxu0
    %v298 = vadd.f32 0.0, %v297
    %299 = vdwg.mxu0
    %v300 = vld [vmem:[%s5] sm:$0xf]
    %v301 = vrot.slane %v296, 4
    %v302 = vadd.f32 %v296, %v301
    %v303 = vrot.slane %v302, 2
    %v304 = vadd.f32 %v302, %v303
    %v305 = vrot.slane %v304, 1
    %v306 = vadd.f32 %v304, %v305
    %v307 = vrot.slane %v298, 4
    %v308 = vadd.f32 %v298, %v307
    %v309 = vrot.slane %v308, 2
    %v310 = vadd.f32 %v308, %v309
    %v311 = vrot.slane %v310, 1
    %v312 = vadd.f32 %v310, %v311
    %v313 = vmul.f32 %v306, %v166
    %v314 = vmul.f32 %v312, %v166
    %v315 = vmul.f32 %v296, %v296
    %v316 = vmul.f32 %v298, %v298
    %v317 = vrot.slane %v315, 4
    %v318 = vadd.f32 %v315, %v317
    %v319 = vrot.slane %v318, 2
    %v320 = vadd.f32 %v318, %v319
    %v321 = vrot.slane %v320, 1
    %v322 = vadd.f32 %v320, %v321
    %v323 = vrot.slane %v316, 4
    %v324 = vadd.f32 %v316, %v323
    %v325 = vrot.slane %v324, 2
    %v326 = vadd.f32 %v324, %v325
    %v327 = vrot.slane %v326, 1
    %v328 = vadd.f32 %v326, %v327
    %v329 = vmul.f32 %v322, %v166
    %v330 = vmul.f32 %v328, %v166
    %v331 = vmul.f32 %v313, %v313
    %v332 = vmul.f32 %v314, %v314
    %v333 = vsub.f32 %v329, %v331
    %v334 = vsub.f32 %v330, %v332
    %v335 = vmax.f32 %v333, 0.0
    %v336 = vmax.f32 %v334, 0.0
    %v337 = vadd.f32 %v335, 1e-05
    %v338 = vadd.f32 %v336, 1e-05
    %v339 = vrsqrt.pop %v337
    %v340 = vrsqrt.pop %v338
    %v343 = vcombine.low %v339, %v340
    %v345 = vunpack.c.l.s4 1983009808
    %v346 = vunpack.c.0.s8 %v345
    %v347 = vlaneseq
    %v348 = vshrl.u32 %v347, 7
    %v349 = vsub.s32 %v346, %v348
    %v350 = vrot.slane %v343, %v349
    %v352 = vmul.f32 %v300, %v350
    %v354 = vlaneseq
    %v355 = vshrl.u32 %v354, 7
    %v356 = vsub.s32 0, %v355
    %v357 = vrot.slane %v352, %v356
    %v358 = vlaneseq
    %v359 = vshrl.u32 %v358, 7
    %v360 = vsub.s32 2, %v359
    %v361 = vrot.slane %v352, %v360
    %v364 = vmul.f32 %v313, %v357
    %v365 = vmul.f32 %v314, %v361
    %v368 = vcombine.low %v364, %v365
    %v370 = vunpack.c.l.s4 1983009808
    %v371 = vunpack.c.0.s8 %v370
    %v372 = vlaneseq
    %v373 = vshrl.u32 %v372, 7
    %v374 = vsub.s32 %v371, %v373
    %v375 = vrot.slane %v368, %v374
    %v376 = vrot.slane %v375, 7
    %v378 = vsub.f32 %v300, %v376
    %v379 = vlaneseq
    %v380 = vshrl.u32 %v379, 7
    %v381 = vsub.s32 0, %v380
    %v382 = vrot.slane %v357, %v381
    %v383 = vlaneseq
    %v384 = vshrl.u32 %v383, 7
    %v385 = vsub.s32 0, %v384
    %v386 = vrot.slane %v361, %v385
    %v387 = vmul.f32 %v296, %v382
    %v388 = vmul.f32 %v298, %v386
    %v390 = vlaneseq
    %v391 = vshrl.u32 %v390, 7
    %v392 = vsub.s32 1, %v391
    %v393 = vrot.slane %v378, %v392
    %v394 = vlaneseq
    %v395 = vshrl.u32 %v394, 7
    %v396 = vsub.s32 3, %v395
    %v397 = vrot.slane %v378, %v396
    %v400 = vlaneseq
    %v401 = vshrl.u32 %v400, 7
    %v402 = vsub.s32 1, %v401
    %v403 = vrot.slane %v393, %v402
    %v404 = vlaneseq
    %v405 = vshrl.u32 %v404, 7
    %v406 = vsub.s32 1, %v405
    %v407 = vrot.slane %v397, %v406
    %v408 = vadd.f32 %v387, %v403
    %v409 = vadd.f32 %v388, %v407
    %v410 = vld [vmem:[#allocation8] sm:$0xff]
    %v411 = vld [vmem:[#allocation8 + $0x8] sm:$0xff]
    %v412 = vld [vmem:[#allocation8 + $0x10] sm:$0xff]
    %v413 = vld [vmem:[#allocation8 + $0x18] sm:$0xff]
    %v414 = vld [vmem:[#allocation8 + $0x20] sm:$0xff]
    %v415 = vld [vmem:[#allocation8 + $0x28] sm:$0xff]
    %v416 = vld [vmem:[#allocation8 + $0x30] sm:$0xff]
    %v417 = vld [vmem:[#allocation8 + $0x38] sm:$0xff]
    %v418 = vld [vmem:[#allocation8 + $0x40] sm:$0xff]
    %v419 = vld [vmem:[#allocation8 + $0x48] sm:$0xff]
    %v420 = vld [vmem:[#allocation8 + $0x50] sm:$0xff]
    %v421 = vld [vmem:[#allocation8 + $0x58] sm:$0xff]
    %v422 = vld [vmem:[#allocation8 + $0x60] sm:$0xff]
    %v423 = vld [vmem:[#allocation8 + $0x68] sm:$0xff]
    %v424 = vld [vmem:[#allocation8 + $0x70] sm:$0xff]
    %v425 = vld [vmem:[#allocation8 + $0x78] sm:$0xff]
    %v426 = vld [vmem:[#allocation8 + $0x80] sm:$0xff]
    %v427 = vld [vmem:[#allocation8 + $0x88] sm:$0xff]
    %v428 = vld [vmem:[#allocation8 + $0x90] sm:$0xff]
    %v429 = vld [vmem:[#allocation8 + $0x98] sm:$0xff]
    %v430 = vld [vmem:[#allocation8 + $0xa0] sm:$0xff]
    %v431 = vld [vmem:[#allocation8 + $0xa8] sm:$0xff]
    %v432 = vld [vmem:[#allocation8 + $0xb0] sm:$0xff]
    %v433 = vld [vmem:[#allocation8 + $0xb8] sm:$0xff]
    %v434 = vld [vmem:[#allocation8 + $0xc0] sm:$0xff]
    %v435 = vld [vmem:[#allocation8 + $0xc8] sm:$0xff]
    %v436 = vld [vmem:[#allocation8 + $0xd0] sm:$0xff]
    %v437 = vld [vmem:[#allocation8 + $0xd8] sm:$0xff]
    %v438 = vld [vmem:[#allocation8 + $0xe0] sm:$0xff]
    %v439 = vld [vmem:[#allocation8 + $0xe8] sm:$0xff]
    %v440 = vld [vmem:[#allocation8 + $0xf0] sm:$0xff]
    %v441 = vld [vmem:[#allocation8 + $0xf8] sm:$0xff]
    %v442 = vld [vmem:[%s6] sm:$0x1]
    %v444 = vlaneseq
    %v445 = vshrl.u32 %v444, 7
    %v446 = vsub.s32 0, %v445
    %v447 = vrot.slane %v442, %v446
    %449 = vmatprep.subr.mxu0 0.0
    %450 = vmatpush1.msra.mxu0 %v410
    %451 = vmatprep.subr.mxu0 0.0
    %452 = vmatpush1.msra.mxu0 %v411
    %453 = vmatprep.subr.mxu0 0.0
    %454 = vmatpush1.msra.mxu0 %v412
    %455 = vmatprep.subr.mxu0 0.0
    %456 = vmatpush1.msra.mxu0 %v413
    %457 = vmatprep.subr.mxu0 0.0
    %458 = vmatpush1.msra.mxu0 %v414
    %459 = vmatprep.subr.mxu0 0.0
    %460 = vmatpush1.msra.mxu0 %v415
    %461 = vmatprep.subr.mxu0 0.0
    %462 = vmatpush1.msra.mxu0 %v416
    %463 = vmatprep.subr.mxu0 0.0
    %464 = vmatpush1.msra.mxu0 %v417
    %465 = vmatprep.subr.mxu0 0.0
    %466 = vmatpush1.msra.mxu0 %v418
    %467 = vmatprep.subr.mxu0 0.0
    %468 = vmatpush1.msra.mxu0 %v419
    %469 = vmatprep.subr.mxu0 0.0
    %470 = vmatpush1.msra.mxu0 %v420
    %471 = vmatprep.subr.mxu0 0.0
    %472 = vmatpush1.msra.mxu0 %v421
    %473 = vmatprep.subr.mxu0 0.0
    %474 = vmatpush1.msra.mxu0 %v422
    %475 = vmatprep.subr.mxu0 0.0
    %476 = vmatpush1.msra.mxu0 %v423
    %477 = vmatprep.subr.mxu0 0.0
    %478 = vmatpush1.msra.mxu0 %v424
    %479 = vmatprep.subr.mxu0 0.0
    %480 = vmatpush1.msra.mxu0 %v425
    %481 = vmatprep.subr.mxu0 0.0
    %482 = vmatpush1.msra.mxu0 %v426
    %483 = vmatprep.subr.mxu0 0.0
    %484 = vmatpush1.msra.mxu0 %v427
    %485 = vmatprep.subr.mxu0 0.0
    %486 = vmatpush1.msra.mxu0 %v428
    %487 = vmatprep.subr.mxu0 0.0
    %488 = vmatpush1.msra.mxu0 %v429
    %489 = vmatprep.subr.mxu0 0.0
    %490 = vmatpush1.msra.mxu0 %v430
    %491 = vmatprep.subr.mxu0 0.0
    %492 = vmatpush1.msra.mxu0 %v431
    %493 = vmatprep.subr.mxu0 0.0
    %494 = vmatpush1.msra.mxu0 %v432
    %495 = vmatprep.subr.mxu0 0.0
    %496 = vmatpush1.msra.mxu0 %v433
    %497 = vmatprep.subr.mxu0 0.0
    %498 = vmatpush1.msra.mxu0 %v434
    %499 = vmatprep.subr.mxu0 0.0
    %500 = vmatpush1.msra.mxu0 %v435
    %501 = vmatprep.subr.mxu0 0.0
    %502 = vmatpush1.msra.mxu0 %v436
    %503 = vmatprep.subr.mxu0 0.0
    %504 = vmatpush1.msra.mxu0 %v437
    %505 = vmatprep.subr.mxu0 0.0
    %506 = vmatpush1.msra.mxu0 %v438
    %507 = vmatprep.subr.mxu0 0.0
    %508 = vmatpush1.msra.mxu0 %v439
    %509 = vmatprep.subr.mxu0 0.0
    %510 = vmatpush1.msra.mxu0 %v440
    %511 = vmatprep.subr.mxu0 0.0
    %512 = vmatpush1.msra.mxu0 %v441
    %513 = vmatprep.mubr.f32.mxu0 %v409
    %514 = vmatmul.mubr.f32.gmra.mrb[0].mxu0 %v408
    %v515 = vpop.f32.mrb[0].mxu0
    %v516 = vadd.f32 %v447, %v515
    %v517 = vpop.f32.mrb[0].mxu0
    %518 = vdwg.mxu0
    %519 = vst [vmem:[#allocation10] sm:$0xff] %v516
    // Predicated region
    $region46: #{tpu_custom_call.1} parent=1 // pred_check
      _
    $region47: #{tpu_custom_call.1} parent=1 // pred_check_branch
      %521 = sbr.rel (0) target = $region49
    $region48: #{tpu_custom_call.1} parent=1 // pred_region
      %s523 = ssub.s32 128, 128
      %524 = vsyncadd [#allocation4], %s523
      %s526 = sshll.u32 [#allocation10], 4
      %s527 = int_to_ptr.vmem [resolvable:$true] %s526
      %529 = dma.vmem_to_hbm [thread:$0]  %s527, 128, %s7, [#allocation4]
    $region49: #{tpu_custom_call.1} parent=1 // pred_fallthru
      _
    // Predicated region
    $region50: #{tpu_custom_call.1} parent=1 // pred_check
      _
    $region51: #{tpu_custom_call.1} parent=1 // pred_check_branch
      %531 = sbr.rel (0) target = $region53
    $region52: #{tpu_custom_call.1} parent=1 // pred_region
      %532 = dma.done [#allocation4], 128
    $region53: #{tpu_custom_call.1} parent=1 // pred_fallthru
      _
    %533 = vsyncpa [#allocation3], 1
    %534 = vsyncpa [#allocation6], 1
    %535 = vsyncpa [#allocation9], 1
    %536 = vsyncpa [#allocation4], 1

</llo_original>
